<compile_context>
chip_gen: v5e
topology: v5e:2x2
jax: 0.10.0
libtpu: 0.0.40
codegen_flags: <defaults>
</compile_context>

<pallas_src>
import math

import jax
import jax.numpy as jnp
from jax.experimental import pallas as pl
from jax.experimental.pallas import tpu as pltpu


_LANE = 128
# ~4 MiB per block: (in + out) x double-buffer = ~16 MiB VMEM; we raise the
# scoped VMEM limit to 32 MiB, which is safe on v5e/v6e (128 MiB physical)
# and v7x (64 MiB physical, 32 MiB scoped default).
_TARGET_BLOCK_BYTES = 4 * 1024 * 1024
_VMEM_LIMIT_BYTES = 32 * 1024 * 1024
# Widest-first: lane-dense output is the biggest single perf lever, and wider
# cols also means fewer, larger grid steps (less per-step overhead).
_COL_CANDIDATES = (4096, 2048, 1024, 512, 256, 128)


def _copy_kernel(x_ref, o_ref):
    # Straight VMEM tile copy; the flatten itself is the 2D re-view done by
    # the wrapper.  Lane-dense, sublane-dense tiles -> unmasked vld/vst.
    o_ref[...] = x_ref[...]


def _choose_dense_view(total: int, itemsize: int):
    """Pick (rows, cols, row_tile, padded_total) for a dense aligned copy."""
    # Sublane packing: f32 -> 8 rows/vreg, bf16 -> 16, int8/fp8 -> 32.
    sub = max(8, 32 // itemsize)
    target_elems = max(sub * _LANE, _TARGET_BLOCK_BYTES // itemsize)

    # Preferred: exact re-view (no padding) with lane-dense cols and a row
    # count that is a multiple of the sublane pack.
    for cols in _COL_CANDIDATES:
        if total % cols == 0 and (total // cols) % sub == 0:
            rows = total // cols
            tr_cap = min(rows, max(sub, (target_elems // cols) // sub * sub))
            # Largest multiple of `sub` <= tr_cap that divides rows
            # (`sub` itself always divides rows here, so this terminates).
            row_tile = sub
            tr = tr_cap
            while tr >= sub:
                if rows % tr == 0:
                    row_tile = tr
                    break
                tr -= sub
            return rows, cols, row_tile, total

    # Fallback: pad the flat buffer up to a whole number of dense blocks.
    cols = 512 if total >= 512 * sub else _LANE
    rows_needed = -(-total // cols)
    rows_needed = ((rows_needed + sub - 1) // sub) * sub
    row_tile = max(sub, min((target_elems // cols) // sub * sub, rows_needed))
    block_elems = row_tile * cols
    padded_total = ((total + block_elems - 1) // block_elems) * block_elems
    rows = padded_total // cols
    return rows, cols, row_tile, padded_total


def _pallas_dense_copy(flat: jax.Array, rows: int, cols: int,
                       row_tile: int) -> jax.Array:
    """Tiled identity copy of a dense (rows, cols) slab through Pallas."""
    x2d = jnp.reshape(flat, (rows, cols))
    grid = (rows // row_tile,)

    y2d = pl.pallas_call(
        _copy_kernel,
        out_shape=jax.ShapeDtypeStruct((rows, cols), flat.dtype),
        grid_spec=pltpu.PrefetchScalarGridSpec(
            num_scalar_prefetch=0,
            grid=grid,
            in_specs=[pl.BlockSpec((row_tile, cols), lambda i: (i, 0))],
            out_specs=pl.BlockSpec((row_tile, cols), lambda i: (i, 0)),
        ),
        compiler_params=pltpu.CompilerParams(
            # Independent tiles: megacore / 2-TC sharding on v7x.
            dimension_semantics=("parallel",),
            vmem_limit_bytes=_VMEM_LIMIT_BYTES,
        ),
    )(x2d)
    return jnp.reshape(y2d, (rows * cols,))


def flatten_pallas(x: jax.Array, dim: int) -> jax.Array:
    """Equivalent of torch.Tensor.flatten(dim), copy done in a Pallas kernel."""
    ndim = x.ndim
    if ndim == 0:
        # torch.flatten on a 0-d tensor returns a 1-element 1-d tensor.
        return jnp.reshape(x, (1,))
    if not (-ndim <= dim < ndim):
        raise ValueError(f"flatten dim {dim} out of range for {ndim}-d input")
    if dim < 0:
        dim += ndim

    out_shape = x.shape[:dim] + (int(math.prod(x.shape[dim:])),)

    total = int(x.size)
    if total == 0:
        return jnp.reshape(x, out_shape)

    itemsize = jnp.dtype(x.dtype).itemsize
    rows, cols, row_tile, padded_total = _choose_dense_view(total, itemsize)

    flat = jnp.reshape(x, (total,))
    if padded_total != total:
        flat = jnp.pad(flat, (0, padded_total - total))

    y_flat = _pallas_dense_copy(flat, rows, cols, row_tile)

    if padded_total != total:
        y_flat = y_flat[:total]
    return jnp.reshape(y_flat, out_shape)


if __name__ == "__main__":
    key = jax.random.PRNGKey(0)

    # Small NCHW input consistent with conv-feature-map -> Flatten(dim=1).
    B, C, H, W = 2, 4, 16, 16
    x = jax.random.normal(key, (B, C, H, W), dtype=jnp.float32)

    dim = 1
    y = flatten_pallas(x, dim)
    y = jax.block_until_ready(y)

    y_ref = jnp.reshape(x, (B, C * H * W))
    assert y.shape == (B, C * H * W), y.shape
    assert y.dtype == x.dtype
    assert bool(jnp.array_equal(y, y_ref))

    # Exercise the padded fallback path (element count not 128-divisible).
    x2 = jax.random.normal(jax.random.PRNGKey(1), (3, 5, 7), dtype=jnp.float32)
    y2 = jax.block_until_ready(flatten_pallas(x2, 0))
    assert y2.shape == (3 * 5 * 7,)
    assert bool(jnp.array_equal(y2, jnp.reshape(x2, (-1,))))

    # Exercise a packed dtype (bf16 -> 16-row sublane pack).
    x3 = jax.random.normal(jax.random.PRNGKey(2), (2, 4, 8, 32),
                           dtype=jnp.bfloat16)
    y3 = jax.block_until_ready(flatten_pallas(x3, 2))
    assert y3.shape == (2, 4, 8 * 32)
    assert bool(jnp.array_equal(y3, jnp.reshape(x3, (2, 4, 8 * 32))))

    # Negative-dim semantics match torch (flatten(-2) collapses last two dims).
    y4 = jax.block_until_ready(flatten_pallas(x, -2))
    assert y4.shape == (B, C, H * W)
    assert bool(jnp.array_equal(y4, jnp.reshape(x, (B, C, H * W))))

    print("KERNEL_OK")
</pallas_src>

<mosaic_0001>
module attributes {stable_mosaic.version = 11 : i64} {
  func.func @_copy_kernel(%arg0: i32, %arg1: memref<8x256xf32, #tpu.memory_space<vmem>>, %arg2: memref<8x256xf32, #tpu.memory_space<vmem>>) attributes {dimension_semantics = [#tpu.dimension_semantics<parallel>], iteration_bounds = array<i64: 1>, scalar_prefetch = 0 : i64, scratch_operands = 0 : i64, tpu.core_type = #tpu.core_type<tc>, window_params = [{transform_indices = @transform_0, window_bounds = array<i64: 8, 256>}, {transform_indices = @transform_1, window_bounds = array<i64: 8, 256>}]} {
    %c0 = arith.constant 0 : index
    %c0_0 = arith.constant 0 : index
    %0 = vector.load %arg1[%c0, %c0_0] : memref<8x256xf32, #tpu.memory_space<vmem>>, vector<8x256xf32>
    %c0_1 = arith.constant 0 : index
    %c0_2 = arith.constant 0 : index
    %1 = vector.load %arg2[%c0_1, %c0_2] : memref<8x256xf32, #tpu.memory_space<vmem>>, vector<8x256xf32>
    tpu.vector_store %arg2[%c0_1, %c0_2], %0 {strides = array<i32>} : memref<8x256xf32, #tpu.memory_space<vmem>>, vector<8x256xf32>,
    return
  }
  func.func @transform_0(%arg0: i32) -> (i32, i32) {
    %c0_i32 = arith.constant 0 : i32
    %c0_i32_0 = arith.constant 0 : i32
    return %arg0, %c0_i32 : i32, i32
  }
  func.func @transform_1(%arg0: i32) -> (i32, i32) {
    %c0_i32 = arith.constant 0 : i32
    %c0_i32_0 = arith.constant 0 : i32
    return %arg0, %c0_i32 : i32, i32
  }
}

</mosaic_0001>

<llo_original>
// kernel: tpu_custom_call.1
$region0: #{tpu_custom_call.1}
  #allocation0 [shape = 'u32[]', space=smem, size = 0x4, offset = 0x4, fixed_abs, tag = 'smem constant byte address 0x4 - core index']
  #allocation1 [shape = 'u32[72,128]{1,0:T(1,128)}', space=vmem, size = 0x9000, scoped, tag = 'internal scratch']
  %s0 = inlined_call_operand.hbm [shape: f32[8,256], index: 0, kind: input, shape index: {}]
  %s1 = inlined_call_operand.hbm [shape: f32[8,256], index: 1, kind: output, shape index: {}]
  %s2 = sld [smem:[#allocation0]]
  $region18: #{tpu_custom_call.1} parent=0
    _
  %s4 = ssub.s32 1, %s2
  %s5 = scalar_select 0, %s4, %s2
  $region1: #{tpu_custom_call.1} parent=0
    #allocation2 [shape = 'u8[8192]{0}', space=vmem, size = 0x2000, scoped, tag = 'input window, operand 0, single buffered']
    #allocation3 [shape = 's32[1]{0}', space=sflag, size = 0x4, scoped, tag = 'scoped memory for tpu_custom_call.1']
    #allocation4 [shape = 's32[1]{0}', space=sflag, size = 0x4, scoped, tag = 'scoped memory for tpu_custom_call.1']
    #allocation5 [shape = 'u8[8192]{0}', space=vmem, size = 0x2000, scoped, tag = 'output window, operand 0, single buffered']
    %6 = vsyncpa [#allocation3], 0
    %7 = vsyncpa [#allocation4], 0
    // Predicated region
    $region2: #{tpu_custom_call.1} parent=1 // pred_check
      _
    $region3: #{tpu_custom_call.1} parent=1 // pred_check_branch
      %9 = sbr.rel (0) target = $region5
    $region4: #{tpu_custom_call.1} parent=1 // pred_region
      %11 = vsyncadd [#allocation3], 0
      %s13 = sshll.u32 %s0, 4
      %s14 = int_to_ptr.hbm [resolvable:$true] %s13
      %s15 = sshll.u32 [#allocation2], 4
      %s16 = int_to_ptr.vmem [resolvable:$true] %s15
      %18 = dma.hbm_to_vmem [thread:$0]  %s14, 256, %s16, [#allocation3]
    $region5: #{tpu_custom_call.1} parent=1 // pred_fallthru
      _
    // Predicated region
    $region6: #{tpu_custom_call.1} parent=1 // pred_check
      _
    $region7: #{tpu_custom_call.1} parent=1 // pred_check_branch
      %20 = sbr.rel (0) target = $region9
    $region8: #{tpu_custom_call.1} parent=1 // pred_region
      %22 = dma.done [#allocation3], 256
    $region9: #{tpu_custom_call.1} parent=1 // pred_fallthru
      _
    %v23 = vld [vmem:[#allocation2] sm:$0xff]
    %v24 = vld [vmem:[#allocation2 + $0x8] sm:$0xff]
    %25 = vst [vmem:[#allocation5] sm:$0xff] %v23
    %26 = vst [vmem:[#allocation5 + $0x8] sm:$0xff] %v24
    // Predicated region
    $region10: #{tpu_custom_call.1} parent=1 // pred_check
      _
    $region11: #{tpu_custom_call.1} parent=1 // pred_check_branch
      %28 = sbr.rel (0) target = $region13
    $region12: #{tpu_custom_call.1} parent=1 // pred_region
      %30 = vsyncadd [#allocation4], 0
      %s32 = sshll.u32 [#allocation5], 4
      %s33 = int_to_ptr.vmem [resolvable:$true] %s32
      %s34 = sshll.u32 %s1, 4
      %s35 = int_to_ptr.hbm [resolvable:$true] %s34
      %37 = dma.vmem_to_hbm [thread:$0]  %s33, 256, %s35, [#allocation4]
    $region13: #{tpu_custom_call.1} parent=1 // pred_fallthru
      _
    // Predicated region
    $region14: #{tpu_custom_call.1} parent=1 // pred_check
      _
    $region15: #{tpu_custom_call.1} parent=1 // pred_check_branch
      %39 = sbr.rel (0) target = $region17
    $region16: #{tpu_custom_call.1} parent=1 // pred_region
      %41 = dma.done [#allocation4], 256
    $region17: #{tpu_custom_call.1} parent=1 // pred_fallthru
      _
    %42 = vsyncpa [#allocation3], 1
    %43 = vsyncpa [#allocation4], 1

</llo_original>
